<compile_context>
chip_gen: v6e
topology: v6e:2x2x1
jax: 0.10.0
libtpu: 0.0.40
codegen_flags: <defaults>
</compile_context>

<pallas_src>
import functools

import jax
import jax.numpy as jnp
from jax.experimental import pallas as pl
from jax.experimental.pallas import tpu as pltpu


# ---------------------------------------------------------------------------
# Generation-aware VMEM budgets
# ---------------------------------------------------------------------------
def _vmem_capacity_bytes():
    """Physical VMEM of the local TPU generation (fallback: 64 MiB, v7x-safe)."""
    try:
        info = pltpu.get_tpu_info()
        for attr in ("vmem_capacity_bytes", "vmem_size_bytes", "vmem_bytes"):
            cap = getattr(info, attr, None)
            if cap:
                return int(cap)
    except Exception:
        pass
    return 64 * 1024 * 1024


_VMEM_CAPACITY = _vmem_capacity_bytes()
# ~104 MiB on 128-MiB chips (v5e/v6e/v4), ~52 MiB on v7x; clamped for safety.
_VMEM_LIMIT_BYTES = max(32 * 1024 * 1024,
                        min(_VMEM_CAPACITY * 13 // 16, 112 * 1024 * 1024))
_VMEM_TILE_BUDGET = max(24 * 1024 * 1024, _VMEM_LIMIT_BYTES - 8 * 1024 * 1024)
_SMALL_PROBLEM_BYTES = 2 * 1024 * 1024


# ---------------------------------------------------------------------------
# Kernels
# ---------------------------------------------------------------------------
def _linear_full_k_kernel(x_ref, w_ref, b_ref, o_ref):
    """One (tm, tn) output tile with the whole K dimension in a single block.

    x: (tm, K), w: (tn, K) [PyTorch layout], b: (1, tn)  ->  o: (tm, tn)
    """
    acc = jax.lax.dot_general(
        x_ref[...],
        w_ref[...],
        dimension_numbers=(((1,), (1,)), ((), ())),  # contract on K (last axes)
        preferred_element_type=jnp.float32,
    )
    o_ref[...] = (acc + b_ref[...]).astype(o_ref.dtype)


def _linear_reduce_k_kernel(x_ref, w_ref, b_ref, o_ref, acc_ref):
    """One (tm, tn) output tile, reducing over the K grid axis (last, 'arbitrary')."""
    k = pl.program_id(2)

    @pl.when(k == 0)
    def _():
        acc_ref[...] = jnp.zeros_like(acc_ref)

    acc_ref[...] += jax.lax.dot_general(
        x_ref[...],
        w_ref[...],
        dimension_numbers=(((1,), (1,)), ((), ())),
        preferred_element_type=jnp.float32,
    )

    @pl.when(k == pl.num_programs(2) - 1)
    def _():
        o_ref[...] = (acc_ref[...] + b_ref[...]).astype(o_ref.dtype)


# ---------------------------------------------------------------------------
# Tile selection (pad-free, VMEM-budgeted, traffic-aware)
# ---------------------------------------------------------------------------
def _round_up(x, m):
    return (x + m - 1) // m * m


def _fit_dim(size, cap, mult):
    """Largest legal block for a dim of `size`: full size if <= cap, else the
    largest multiple of `mult` that fits under cap (never exceeding size)."""
    if size <= cap:
        return size
    return min(size, max(mult, cap // mult * mult))


def _halve(cur, mult):
    """One halving step that stays a multiple of `mult` (and <= cur)."""
    if cur <= mult:
        return cur
    return max(mult, (cur // 2) // mult * mult)


def _choose_tiles(B, N, K, xb, wb, ob, bb, budget, tm_cap, tn_cap, tk_cap):
    """Returns (tm, tn, tk, kt, Kp).  Blocks never exceed array dims; only the
    K axis may need padding (Kp > K), and only in the reduce-K fallback."""

    def vmem_need(tm, tn, tk, reduce_k):
        n = (2 * tm * tk * xb          # x tile, double-buffered
             + 2 * tn * tk * wb        # weight tile, double-buffered
             + 2 * tm * tn * ob        # output tile, double-buffered
             + 2 * tn * bb)            # bias tile
        if reduce_k:
            n += tm * tn * 4           # f32 accumulator scratch
        return n

    # ---- full-K fast path: weight tile stays resident across batch tiles ----
    tm = _fit_dim(B, tm_cap, 8)
    tn = _fit_dim(N, tn_cap, 128)
    if tk_cap is None or tk_cap >= K:
        while vmem_need(tm, tn, K, False) > budget:
            if tm > 256:
                tm = _halve(tm, 8)
            elif tn > 256:
                tn = _halve(tn, 128)
            elif tm > 8:
                tm = _halve(tm, 8)
            elif tn > 128:
                tn = _halve(tn, 128)
            else:
                break
        if vmem_need(tm, tn, K, False) <= budget:
            # v7x has 2 TensorCores: make sure a 'parallel' axis has >= 2 steps.
            jt = -(-N // tn)
            it = -(-B // tm)
            if jt == 1 and it == 1 and B >= 16:
                tm = min(B, _round_up(-(-B // 2), 8))
            return tm, tn, K, 1, K           # tk == K -> never pad K here

    # ---- reduce-K path (K too large for a resident full-K tile) ----
    tm = _fit_dim(B, min(tm_cap, 512), 8)
    tn = _fit_dim(N, min(tn_cap, 512), 128)
    while vmem_need(tm, tn, 128, True) > budget and (tm > 8 or tn > 128):
        if tm > 128:
            tm = _halve(tm, 8)
        elif tn > 128:
            tn = _halve(tn, 128)
        else:
            tm = _halve(tm, 8)

    Kp = _round_up(K, 128)
    per_k = 2 * (tm * xb + tn * wb)
    fixed = 2 * tm * tn * ob + 2 * tn * bb + tm * tn * 4
    tk_max = max(128, (budget - fixed) // per_k // 128 * 128)
    if tk_cap is not None:
        tk_max = min(tk_max, max(128, tk_cap // 128 * 128))
    # Largest multiple of 128 that exactly divides Kp: no ragged K block ever
    # enters the reduction (correctness), fewest k steps (v5e acc-RMW cost).
    q = Kp // 128
    d = 1
    for cand in range(min(q, tk_max // 128), 0, -1):
        if q % cand == 0:
            d = cand
            break
    tk = 128 * d
    return tm, tn, tk, Kp // tk, Kp


# ---------------------------------------------------------------------------
# Wrapper
# ---------------------------------------------------------------------------
@functools.partial(jax.jit, static_argnames=("tm", "tn", "tk", "force_pallas"))
def supervised_head_forward(x, weight, bias, *, tm=None, tn=None, tk=None,
                            force_pallas=False):
    """y = x @ weight.T + bias  (PyTorch nn.Linear semantics).

    x:      (B, in_dim)
    weight: (num_classes, in_dim)   -- PyTorch layout (NOT transposed)
    bias:   (num_classes,)
    tm/tn/tk act as optional upper bounds on the auto-selected tile sizes.
    """
    B, K = x.shape
    N, K2 = weight.shape
    assert K2 == K, "weight must be (num_classes, in_dim)"
    xb = x.dtype.itemsize
    wb = weight.dtype.itemsize
    out_dtype = x.dtype
    ob = out_dtype.itemsize

    bias2d = bias.reshape(1, N)
    bb = bias2d.dtype.itemsize

    cost = pl.CostEstimate(
        flops=2 * B * K * N,
        transcendentals=0,
        bytes_accessed=B * K * xb + N * K * wb + N * bb + B * N * ob,
    )

    total_bytes = B * K * xb + N * K * wb + B * N * ob
    is_tiny = (total_bytes <= _SMALL_PROBLEM_BYTES
               and tm is None and tn is None and tk is None)

    if is_tiny and not force_pallas:
        # Custom-call + pipeline setup overhead dominates a GEMM this small;
        # XLA's fused dot is strictly cheaper here.
        return (x @ weight.T + bias).astype(out_dtype)

    if is_tiny:
        # One full-array block: no padding, no reduction axis, one grid step.
        return pl.pallas_call(
            _linear_full_k_kernel,
            out_shape=jax.ShapeDtypeStruct((B, N), out_dtype),
            grid_spec=pltpu.PrefetchScalarGridSpec(
                num_scalar_prefetch=0,
                grid=(1, 1),
                in_specs=[
                    pl.BlockSpec((B, K), lambda j, i: (i, 0)),
                    pl.BlockSpec((N, K), lambda j, i: (j, 0)),
                    pl.BlockSpec((1, N), lambda j, i: (0, j)),
                ],
                out_specs=pl.BlockSpec((B, N), lambda j, i: (i, j)),
            ),
            compiler_params=pltpu.CompilerParams(
                dimension_semantics=("parallel", "parallel"),
                vmem_limit_bytes=_VMEM_LIMIT_BYTES,
            ),
            cost_estimate=cost,
        )(x, weight, bias2d)

    tm_, tn_, tk_, kt, Kp = _choose_tiles(
        B, N, K, xb, wb, ob, bb, _VMEM_TILE_BUDGET,
        tm or 1024, tn or 2048, tk)

    # Only the contraction axis ever needs zero padding (and only in the rare
    # reduce-K case with K not a multiple of 128).  M/N edge blocks stay ragged:
    # Pallas masks out-of-bounds reads/writes on partial edge blocks.
    if Kp != K:
        x_in = jnp.pad(x, ((0, 0), (0, Kp - K)))
        w_in = jnp.pad(weight, ((0, 0), (0, Kp - K)))
    else:
        x_in, w_in = x, weight

    jt = -(-N // tn_)
    it = -(-B // tm_)

    if kt == 1:
        # Classes (j) outermost, batch (i) innermost: the (tn, K) weight tile keeps
        # the same block index across consecutive i steps, so it is DMA'd once per j.
        return pl.pallas_call(
            _linear_full_k_kernel,
            out_shape=jax.ShapeDtypeStruct((B, N), out_dtype),
            grid_spec=pltpu.PrefetchScalarGridSpec(
                num_scalar_prefetch=0,
                grid=(jt, it),
                in_specs=[
                    pl.BlockSpec((tm_, Kp), lambda j, i: (i, 0)),
                    pl.BlockSpec((tn_, Kp), lambda j, i: (j, 0)),
                    pl.BlockSpec((1, tn_), lambda j, i: (0, j)),
                ],
                out_specs=pl.BlockSpec((tm_, tn_), lambda j, i: (i, j)),
            ),
            compiler_params=pltpu.CompilerParams(
                dimension_semantics=("parallel", "parallel"),
                vmem_limit_bytes=_VMEM_LIMIT_BYTES,
            ),
            cost_estimate=cost,
        )(x_in, w_in, bias2d)

    # K too large for one resident tile: reduction axis last + 'arbitrary',
    # f32 accumulator, tk chosen to divide Kp exactly (no ragged K blocks).
    return pl.pallas_call(
        _linear_reduce_k_kernel,
        out_shape=jax.ShapeDtypeStruct((B, N), out_dtype),
        grid_spec=pltpu.PrefetchScalarGridSpec(
            num_scalar_prefetch=0,
            grid=(jt, it, kt),
            in_specs=[
                pl.BlockSpec((tm_, tk_), lambda j, i, k: (i, k)),
                pl.BlockSpec((tn_, tk_), lambda j, i, k: (j, k)),
                pl.BlockSpec((1, tn_), lambda j, i, k: (0, j)),
            ],
            out_specs=pl.BlockSpec((tm_, tn_), lambda j, i, k: (i, j)),
            scratch_shapes=[pltpu.VMEM((tm_, tn_), jnp.float32)],
        ),
        compiler_params=pltpu.CompilerParams(
            dimension_semantics=("parallel", "parallel", "arbitrary"),
            vmem_limit_bytes=_VMEM_LIMIT_BYTES,
        ),
        cost_estimate=cost,
    )(x_in, w_in, bias2d)


if __name__ == "__main__":
    key = jax.random.PRNGKey(0)
    k1, k2, k3, k4, k5, k6 = jax.random.split(key, 6)

    # ---- 1) SupervisedHead(in_dim=32, num_classes=10), batch=2 (spec shapes) ----
    batch, in_dim, num_classes = 2, 32, 10
    bound = 1.0 / jnp.sqrt(in_dim)
    x = jax.random.normal(k1, (batch, in_dim), dtype=jnp.float32)
    weight = jax.random.uniform(
        k2, (num_classes, in_dim), minval=-bound, maxval=bound, dtype=jnp.float32)
    bias = jax.random.uniform(
        k3, (num_classes,), minval=-bound, maxval=bound, dtype=jnp.float32)

    y = supervised_head_forward(x, weight, bias, force_pallas=True)  # exercise kernel
    jax.block_until_ready(y)
    y_ref = x @ weight.T + bias
    assert y.shape == (batch, num_classes)
    assert jnp.allclose(y, y_ref, atol=1e-5, rtol=1e-5)

    # ---- 2) larger head: exercises the pad-free tiled path with ragged edges ----
    B2, D2, C2 = 500, 768, 600
    bound2 = 1.0 / jnp.sqrt(D2)
    x2 = jax.random.normal(k4, (B2, D2), dtype=jnp.float32)
    w2 = jax.random.uniform(k5, (C2, D2), minval=-bound2, maxval=bound2,
                            dtype=jnp.float32)
    b2 = jax.random.uniform(k6, (C2,), minval=-bound2, maxval=bound2,
                            dtype=jnp.float32)
    y2 = supervised_head_forward(x2, w2, b2)
    jax.block_until_ready(y2)
    y2_ref = x2 @ w2.T + b2
    assert y2.shape == (B2, C2)
    assert jnp.allclose(y2, y2_ref, atol=2e-2, rtol=2e-2)

    print("KERNEL_OK")
</pallas_src>

<mosaic_0001>
module attributes {stable_mosaic.version = 11 : i64} {
  func.func @_linear_full_k_kernel(%arg0: i32, %arg1: i32, %arg2: memref<2x32xf32, #tpu.memory_space<vmem>>, %arg3: memref<10x32xf32, #tpu.memory_space<vmem>>, %arg4: memref<1x10xf32, #tpu.memory_space<vmem>>, %arg5: memref<2x10xf32, #tpu.memory_space<vmem>>) attributes {dimension_semantics = [#tpu.dimension_semantics<parallel>, #tpu.dimension_semantics<parallel>], iteration_bounds = array<i64: 1, 1>, scalar_prefetch = 0 : i64, scratch_operands = 0 : i64, tpu.core_type = #tpu.core_type<tc>, window_params = [{transform_indices = @transform_0, window_bounds = array<i64: 2, 32>}, {transform_indices = @transform_1, window_bounds = array<i64: 10, 32>}, {transform_indices = @transform_2, window_bounds = array<i64: 1, 10>}, {transform_indices = @transform_3, window_bounds = array<i64: 2, 10>}]} {
    %c0 = arith.constant 0 : index
    %c0_0 = arith.constant 0 : index
    %0 = vector.load %arg2[%c0, %c0_0] : memref<2x32xf32, #tpu.memory_space<vmem>>, vector<2x32xf32>
    %c0_1 = arith.constant 0 : index
    %c0_2 = arith.constant 0 : index
    %1 = vector.load %arg3[%c0_1, %c0_2] : memref<10x32xf32, #tpu.memory_space<vmem>>, vector<10x32xf32>
    %cst = arith.constant dense<0.000000e+00> : vector<2x10xf32>
    %2 = tpu.matmul %0, %1, %cst {dimension_numbers = #tpu.dot_dimension_numbers<[1], [1], [0], [0], [0, 0, 1, 0], [], []>} : vector<2x32xf32>, vector<10x32xf32>, vector<2x10xf32> -> vector<2x10xf32>
    %c0_3 = arith.constant 0 : index
    %c0_4 = arith.constant 0 : index
    %3 = vector.load %arg4[%c0_3, %c0_4] : memref<1x10xf32, #tpu.memory_space<vmem>>, vector<1x10xf32>
    %4 = vector.broadcast %3 : vector<1x10xf32> to vector<2x10xf32>
    %5 = arith.addf %2, %4 : vector<2x10xf32>
    %c0_5 = arith.constant 0 : index
    %c0_6 = arith.constant 0 : index
    %6 = vector.load %arg5[%c0_5, %c0_6] : memref<2x10xf32, #tpu.memory_space<vmem>>, vector<2x10xf32>
    tpu.vector_store %arg5[%c0_5, %c0_6], %5 {strides = array<i32>} : memref<2x10xf32, #tpu.memory_space<vmem>>, vector<2x10xf32>,
    return
  }
  func.func @transform_0(%arg0: i32, %arg1: i32) -> (i32, i32) {
    %c0_i32 = arith.constant 0 : i32
    %c0_i32_0 = arith.constant 0 : i32
    return %arg1, %c0_i32 : i32, i32
  }
  func.func @transform_1(%arg0: i32, %arg1: i32) -> (i32, i32) {
    %c0_i32 = arith.constant 0 : i32
    %c0_i32_0 = arith.constant 0 : i32
    return %arg0, %c0_i32 : i32, i32
  }
  func.func @transform_2(%arg0: i32, %arg1: i32) -> (i32, i32) {
    %c0_i32 = arith.constant 0 : i32
    %c0_i32_0 = arith.constant 0 : i32
    return %c0_i32, %arg0 : i32, i32
  }
  func.func @transform_3(%arg0: i32, %arg1: i32) -> (i32, i32) {
    %c0_i32 = arith.constant 0 : i32
    return %arg1, %arg0 : i32, i32
  }
}

</mosaic_0001>

<llo_original>
// kernel: supervised_head_forward.1
$region0: #{supervised_head_forward.1}
  #allocation0 [shape = 'u32[]', space=smem, size = 0x4, offset = 0x4, fixed_abs, tag = 'smem constant byte address 0x4 - core index']
  #allocation1 [shape = 'u32[144,128]{1,0:T(1,128)}', space=vmem, size = 0x12000, scoped, tag = 'internal scratch']
  %s0 = inlined_call_operand.hbm [shape: f32[2,32], index: 0, kind: input, shape index: {}]
  %s1 = inlined_call_operand.hbm [shape: f32[10,32], index: 1, kind: input, shape index: {}]
  %s2 = inlined_call_operand.vmem [shape: f32[1,10], index: 2, kind: input, shape index: {}]
  %s3 = inlined_call_operand.hbm [shape: f32[2,10], index: 3, kind: output, shape index: {}]
  %s4 = sld [smem:[#allocation0]]
  $region30: #{supervised_head_forward.1} parent=0
    _
  %s6 = ssub.s32 1, %s4
  %s7 = scalar_select 0, %s6, %s4
  $region1: #{supervised_head_forward.1} parent=0
    #allocation2 [shape = 'u8[1024]{0}', space=vmem, size = 0x400, scoped, tag = 'input window, operand 0, single buffered']
    #allocation3 [shape = 's32[1]{0}', space=sflag, size = 0x4, scoped, tag = 'scoped memory for supervised_head_forward.1']
    #allocation4 [shape = 's32[1]{0}', space=sflag, size = 0x4, scoped, tag = 'scoped memory for supervised_head_forward.1']
    #allocation5 [shape = 'u8[8192]{0}', space=vmem, size = 0x2000, scoped, tag = 'input window, operand 1, single buffered']
    #allocation6 [shape = 's32[1]{0}', space=sflag, size = 0x4, scoped, tag = 'scoped memory for supervised_head_forward.1']
    #allocation7 [shape = 'u8[1024]{0}', space=vmem, size = 0x400, scoped, tag = 'output window, operand 0, single buffered']
    %8 = vsyncpa [#allocation3], 0
    %9 = vsyncpa [#allocation6], 0
    %10 = vsyncpa [#allocation4], 0
    // Predicated region
    $region2: #{supervised_head_forward.1} parent=1 // pred_check
      _
    $region3: #{supervised_head_forward.1} parent=1 // pred_check_branch
      %12 = sbr.rel (0) target = $region5
    $region4: #{supervised_head_forward.1} parent=1 // pred_region
      %s14 = ssub.s32 32, 32
      %15 = vsyncadd [#allocation3], %s14
      %s17 = sshll.u32 [#allocation2], 4
      %s18 = int_to_ptr.vmem [resolvable:$true] %s17
      %20 = dma.hbm_to_vmem [thread:$0]  %s0, 32, %s18, [#allocation3]
    $region5: #{supervised_head_forward.1} parent=1 // pred_fallthru
      _
    // Predicated region
    $region6: #{supervised_head_forward.1} parent=1 // pred_check
      _
    $region7: #{supervised_head_forward.1} parent=1 // pred_check_branch
      %22 = sbr.rel (0) target = $region9
    $region8: #{supervised_head_forward.1} parent=1 // pred_region
      %s24 = ssub.s32 256, 256
      %25 = vsyncadd [#allocation6], %s24
      %s26 = sshll.u32 [#allocation5], 4
      %s27 = int_to_ptr.vmem [resolvable:$true] %s26
      %32 = dma.hbm_to_vmem [thread:$0]  %s1, 256, %s27, [#allocation6], 128, 128, 8
    $region9: #{supervised_head_forward.1} parent=1 // pred_fallthru
      _
    // Predicated region
    $region10: #{supervised_head_forward.1} parent=1 // pred_check
      _
    $region11: #{supervised_head_forward.1} parent=1 // pred_check_branch
      %34 = sbr.rel (0) target = $region13
    $region12: #{supervised_head_forward.1} parent=1 // pred_region
      _
    $region13: #{supervised_head_forward.1} parent=1 // pred_fallthru
      _
    // Predicated region
    $region14: #{supervised_head_forward.1} parent=1 // pred_check
      _
    $region15: #{supervised_head_forward.1} parent=1 // pred_check_branch
      %36 = sbr.rel (0) target = $region17
    $region16: #{supervised_head_forward.1} parent=1 // pred_region
      %37 = dma.done [#allocation3], 32
    $region17: #{supervised_head_forward.1} parent=1 // pred_fallthru
      _
    // Predicated region
    $region18: #{supervised_head_forward.1} parent=1 // pred_check
      _
    $region19: #{supervised_head_forward.1} parent=1 // pred_check_branch
      %39 = sbr.rel (0) target = $region21
    $region20: #{supervised_head_forward.1} parent=1 // pred_region
      %40 = dma.done [#allocation6], 256
    $region21: #{supervised_head_forward.1} parent=1 // pred_fallthru
      _
    %v41 = vld [vmem:[#allocation2] sm:$0x3]
    %v42 = vld [vmem:[#allocation5] sm:$0xff]
    %v43 = vld [vmem:[#allocation5 + $0x8] sm:$0x3]
    %v44 = vld [vmem:[%s2] sm:$0x1]
    %v46 = vlaneseq
    %v47 = vshrl.u32 %v46, 7
    %v48 = vsub.s32 0, %v47
    %v49 = vrot.slane %v44, %v48
    %vm51 = vcmask 261120
    %v53 = vsel %vm51, %v41, 0
    %v56 = vsel %vm51, %v42, 0
    %v59 = vsel %vm51, %v43, 0
    %61 = vmatprep.subr.mxu0 0.0
    %62 = vmatpush1.xpose.msra.mxu0 0.0
    %63 = vmatprep.subr.mxu0 0.0
    %64 = vmatpush1.xpose.msra.mxu0 0.0
    %65 = vmatprep.subr.mxu0 0.0
    %66 = vmatpush1.xpose.msra.mxu0 0.0
    %67 = vmatprep.subr.mxu0 0.0
    %68 = vmatpush1.xpose.msra.mxu0 0.0
    %69 = vmatprep.subr.mxu0 0.0
    %70 = vmatpush1.xpose.msra.mxu0 0.0
    %71 = vmatprep.subr.mxu0 0.0
    %72 = vmatpush1.xpose.msra.mxu0 0.0
    %73 = vmatprep.subr.mxu0 0.0
    %74 = vmatpush1.xpose.msra.mxu0 0.0
    %75 = vmatprep.subr.mxu0 0.0
    %76 = vmatpush1.xpose.msra.mxu0 0.0
    %77 = vmatprep.subr.mxu0 0.0
    %78 = vmatpush1.xpose.msra.mxu0 0.0
    %79 = vmatprep.subr.mxu0 0.0
    %80 = vmatpush1.xpose.msra.mxu0 0.0
    %81 = vmatprep.subr.mxu0 0.0
    %82 = vmatpush1.xpose.msra.mxu0 0.0
    %83 = vmatprep.subr.mxu0 0.0
    %84 = vmatpush1.xpose.msra.mxu0 0.0
    %85 = vmatprep.subr.mxu0 0.0
    %86 = vmatpush1.xpose.msra.mxu0 0.0
    %87 = vmatprep.subr.mxu0 0.0
    %88 = vmatpush1.xpose.msra.mxu0 0.0
    %89 = vmatprep.subr.mxu0 0.0
    %90 = vmatpush1.xpose.msra.mxu0 %v59
    %91 = vmatprep.subr.mxu0 0.0
    %92 = vmatpush1.xpose.msra.mxu0 %v56
    %93 = vmatprep.subr.mxu0 0.0
    %94 = vmatpush2.xpose.msra.mxu0 0.0
    %95 = vmatprep.subr.mxu0 0.0
    %96 = vmatpush2.xpose.msra.mxu0 0.0
    %97 = vmatprep.subr.mxu0 0.0
    %98 = vmatpush2.xpose.msra.mxu0 0.0
    %99 = vmatprep.subr.mxu0 0.0
    %100 = vmatpush2.xpose.msra.mxu0 0.0
    %101 = vmatprep.subr.mxu0 0.0
    %102 = vmatpush2.xpose.msra.mxu0 0.0
    %103 = vmatprep.subr.mxu0 0.0
    %104 = vmatpush2.xpose.msra.mxu0 0.0
    %105 = vmatprep.subr.mxu0 0.0
    %106 = vmatpush2.xpose.msra.mxu0 0.0
    %107 = vmatprep.subr.mxu0 0.0
    %108 = vmatpush2.xpose.msra.mxu0 0.0
    %109 = vmatprep.subr.mxu0 0.0
    %110 = vmatpush2.xpose.msra.mxu0 0.0
    %111 = vmatprep.subr.mxu0 0.0
    %112 = vmatpush2.xpose.msra.mxu0 0.0
    %113 = vmatprep.subr.mxu0 0.0
    %114 = vmatpush2.xpose.msra.mxu0 0.0
    %115 = vmatprep.subr.mxu0 0.0
    %116 = vmatpush2.xpose.msra.mxu0 0.0
    %117 = vmatprep.subr.mxu0 0.0
    %118 = vmatpush2.xpose.msra.mxu0 0.0
    %119 = vmatprep.subr.mxu0 0.0
    %120 = vmatpush2.xpose.msra.mxu0 0.0
    %121 = vmatprep.subr.mxu0 0.0
    %122 = vmatpush2.xpose.msra.mxu0 0.0
    %123 = vmatprep.subr.mxu0 0.0
    %124 = vmatpush2.xpose.msra.mxu0 0.0
    %125 = vmatprep.mubr.f32.mxu0 0.0
    %126 = vmatmul.mubr.f32.gmra.mxu0 %v53
    %v127 = vpop.f32.mrf.mxu0
    %v128 = vadd.f32 %v49, %v127
    %v129 = vpop.f32.mrf.mxu0
    %130 = vdwg.mxu0
    %vm131 = vcmask 74752
    %132 = vst.msk [vmem:[#allocation7] sm:$0x3] %vm131, %v128
    // Predicated region
    $region22: #{supervised_head_forward.1} parent=1 // pred_check
      _
    $region23: #{supervised_head_forward.1} parent=1 // pred_check_branch
      %134 = sbr.rel (0) target = $region25
    $region24: #{supervised_head_forward.1} parent=1 // pred_region
      %s136 = ssub.s32 32, 32
      %137 = vsyncadd [#allocation4], %s136
      %s139 = sshll.u32 [#allocation7], 4
      %s140 = int_to_ptr.vmem [resolvable:$true] %s139
      %142 = dma.vmem_to_hbm [thread:$0]  %s140, 32, %s3, [#allocation4]
    $region25: #{supervised_head_forward.1} parent=1 // pred_fallthru
      _
    // Predicated region
    $region26: #{supervised_head_forward.1} parent=1 // pred_check
      _
    $region27: #{supervised_head_forward.1} parent=1 // pred_check_branch
      %144 = sbr.rel (0) target = $region29
    $region28: #{supervised_head_forward.1} parent=1 // pred_region
      %145 = dma.done [#allocation4], 32
    $region29: #{supervised_head_forward.1} parent=1 // pred_fallthru
      _
    %146 = vsyncpa [#allocation3], 1
    %147 = vsyncpa [#allocation6], 1
    %148 = vsyncpa [#allocation4], 1

</llo_original>
